<compile_context>
chip_gen: v7x
topology: tpu7x:2x2x1
jax: 0.10.0
libtpu: 0.0.40
codegen_flags: <defaults>
</compile_context>

<pallas_src>
import jax
import jax.numpy as jnp
from jax import lax
from jax.experimental import pallas as pl
from jax.experimental.pallas import tpu as pltpu


def _chomp1d_copy_kernel(x_ref, o_ref):
    # Both refs are identically shaped (TR, TL) tiles of the kept region; the
    # chomp is expressed in the BlockSpecs / out_shape.  Pure copy.
    o_ref[...] = x_ref[...]


# Sublane packing per dtype itemsize (f32 -> 8, bf16/f16 -> 16, int8/fp8 -> 32).
_SUBLANE_PACK = {4: 8, 2: 16, 1: 32}
_TARGET_BLOCK_BYTES = 2 * 1024 * 1024    # ~2 MiB per buffer (near HBM roofline)
_MAX_PIPELINE_BYTES = 12 * 1024 * 1024   # 2 in + 2 out buffers; fits v5e's 16 MiB default


def chomp1d(x: jax.Array, chomp_size: int, *, tile_r: int | None = None,
            tile_l: int | None = None, min_pallas_bytes: int = 1 << 20) -> jax.Array:
    """Pallas equivalent of PyTorch Chomp1d(chomp_size)(x) for x of shape (N, C, L)."""
    n, c, l = x.shape
    if chomp_size < 0:
        raise ValueError("chomp_size must be non-negative")

    # PyTorch parity: x[:, :, :-k].  k == 0 (":-0") and over-chomping (k >= L)
    # both yield an empty temporal axis.
    l_out = max(l - chomp_size, 0) if chomp_size > 0 else 0
    if l_out == 0:
        return jnp.zeros((n, c, 0), dtype=x.dtype)

    itemsize = jnp.dtype(x.dtype).itemsize
    out_bytes = n * c * l_out * itemsize

    # Small / mid-size problems (or lane dim < 128): XLA's contiguous-tail
    # slice is already near the HBM roofline; a Pallas launch is overhead.
    if out_bytes < min_pallas_bytes or l_out < 128:
        return lax.slice(x, (0, 0, 0), (n, c, l_out))

    # Collapse (N, C) into one row axis (free reshape on a contiguous array).
    r = n * c
    x2 = x.reshape(r, l)

    pack = _SUBLANE_PACK.get(itemsize, 8)

    # ---- tile selection: lane-dense, byte-constant across dtypes ----
    if tile_l is None:
        # ~2 KiB of lanes per row (512 f32 / 1024 bf16 / 2048 int8), clamped to
        # the largest multiple of 128 that fits in l_out (l_out >= 128 here).
        lane_target = (512 * 4) // itemsize
        tile_l = min(lane_target, (l_out // 128) * 128)
    if tile_r is None:
        # Rows per block so each block is ~_TARGET_BLOCK_BYTES, rounded to the
        # sublane pack; use the full row axis when it is small (always legal).
        rows_target = max(_TARGET_BLOCK_BYTES // (tile_l * itemsize), pack)
        tile_r = r if r <= rows_target else (rows_target // pack) * pack

    # Clamp so the pipeline footprint (2 input + 2 output buffers) stays well
    # under every generation's scoped-VMEM default (v7x has only 64 MiB VMEM).
    block_bytes = tile_r * tile_l * itemsize
    if 4 * block_bytes > _MAX_PIPELINE_BYTES:
        shrink = pl.cdiv(4 * block_bytes, _MAX_PIPELINE_BYTES)
        tile_r = max((tile_r // shrink // pack) * pack, pack)

    grid = (pl.cdiv(r, tile_r), pl.cdiv(l_out, tile_l))

    out2 = pl.pallas_call(
        _chomp1d_copy_kernel,
        out_shape=jax.ShapeDtypeStruct((r, l_out), x.dtype),
        grid=grid,
        in_specs=[
            # Same block indices as the output: only the kept L_out prefix of
            # the input is DMA'd (plus at most one partial edge block); the
            # chomped tail never reaches VMEM in full.
            pl.BlockSpec((tile_r, tile_l), lambda ri, li: (ri, li)),
        ],
        out_specs=pl.BlockSpec((tile_r, tile_l), lambda ri, li: (ri, li)),
        compiler_params=pltpu.CompilerParams(
            # Pure mem-bound copy; every block independent -> megacore-shardable
            # on v7x, neutral on single-TC v5e/v6e.
            dimension_semantics=("parallel", "parallel"),
        ),
    )(x2)
    return out2.reshape(n, c, l_out)


if __name__ == "__main__":
    key = jax.random.PRNGKey(0)
    k1, k2, k3 = jax.random.split(key, 3)

    # 1) Tiny shape at the PyTorch-test scale: dispatches to the XLA slice
    #    fast path (a Pallas launch is pure overhead here).
    x_small = jax.random.normal(k1, (2, 4, 16), dtype=jnp.float32)
    out_small = jax.block_until_ready(chomp1d(x_small, 3))
    assert out_small.shape == (2, 4, 13)
    assert out_small.dtype == x_small.dtype
    assert jnp.array_equal(out_small, x_small[:, :, :-3])

    # 2) Pallas path, aligned tiles: (2, 8, 517) f32, chomp=5 -> L_out=512.
    #    Collapsed rows R=16 -> single (16, 512) block, grid=(1, 1).
    x_a = jax.random.normal(k2, (2, 8, 517), dtype=jnp.float32)
    out_a = jax.block_until_ready(chomp1d(x_a, 5, min_pallas_bytes=0))
    assert out_a.shape == (2, 8, 512)
    assert out_a.dtype == x_a.dtype
    assert jnp.array_equal(out_a, x_a[:, :, :-5])

    # 3) Pallas path, ragged length tail (L_out % TL != 0), thin-channel bf16:
    #    exercises the collapsed-row tiling, the masked output store, and the
    #    partially-out-of-bounds final input tile.
    x_b = jax.random.normal(k3, (2, 12, 700), dtype=jnp.bfloat16)
    out_b = jax.block_until_ready(chomp1d(x_b, 4, min_pallas_bytes=0))
    assert out_b.shape == (2, 12, 696)
    assert out_b.dtype == x_b.dtype
    assert jnp.array_equal(out_b, x_b[:, :, :-4])

    print("KERNEL_OK")
</pallas_src>

<mosaic_0001>
module attributes {stable_mosaic.version = 11 : i64} {
  func.func @_chomp1d_copy_kernel(%arg0: i32, %arg1: i32, %arg2: memref<16x512xf32, #tpu.memory_space<vmem>>, %arg3: memref<16x512xf32, #tpu.memory_space<vmem>>) attributes {dimension_semantics = [#tpu.dimension_semantics<parallel>, #tpu.dimension_semantics<parallel>], iteration_bounds = array<i64: 1, 1>, scalar_prefetch = 0 : i64, scratch_operands = 0 : i64, tpu.core_type = #tpu.core_type<tc>, window_params = [{transform_indices = @transform_0, window_bounds = array<i64: 16, 512>}, {transform_indices = @transform_1, window_bounds = array<i64: 16, 512>}]} {
    %c0 = arith.constant 0 : index
    %c0_0 = arith.constant 0 : index
    %0 = vector.load %arg2[%c0, %c0_0] : memref<16x512xf32, #tpu.memory_space<vmem>>, vector<16x512xf32>
    %c0_1 = arith.constant 0 : index
    %c0_2 = arith.constant 0 : index
    %1 = vector.load %arg3[%c0_1, %c0_2] : memref<16x512xf32, #tpu.memory_space<vmem>>, vector<16x512xf32>
    tpu.vector_store %arg3[%c0_1, %c0_2], %0 {strides = array<i32>} : memref<16x512xf32, #tpu.memory_space<vmem>>, vector<16x512xf32>,
    return
  }
  func.func @transform_0(%arg0: i32, %arg1: i32) -> (i32, i32) {
    %c0_i32 = arith.constant 0 : i32
    return %arg0, %arg1 : i32, i32
  }
  func.func @transform_1(%arg0: i32, %arg1: i32) -> (i32, i32) {
    %c0_i32 = arith.constant 0 : i32
    return %arg0, %arg1 : i32, i32
  }
}

</mosaic_0001>

<llo_original>
// kernel: tpu_custom_call.1
$region0: #{tpu_custom_call.1}
  #allocation0 [shape = 'u32[]', space=smem, size = 0x4, offset = 0x4, fixed_abs, tag = 'smem constant byte address 0x4 - core index']
  #allocation1 [shape = 'u32[144,128]{1,0:T(1,128)}', space=vmem, size = 0x12000, scoped, tag = 'internal scratch']
  %s0 = inlined_call_operand.hbm [shape: f32[16,517], index: 0, kind: input, shape index: {}]
  %s1 = inlined_call_operand.hbm [shape: f32[16,512], index: 1, kind: output, shape index: {}]
  %s2 = sld [smem:[#allocation0]]
  $region18: #{tpu_custom_call.1} parent=0
    _
  %s4 = ssub.s32 1, %s2
  %s5 = scalar_select 0, %s4, %s2
  $region1: #{tpu_custom_call.1} parent=0
    #allocation2 [shape = 'u8[32768]{0}', space=vmem, size = 0x8000, scoped, tag = 'input window, operand 0, single buffered']
    #allocation3 [shape = 's32[1]{0}', space=sflag, size = 0x4, scoped, tag = 'scoped memory for tpu_custom_call.1']
    #allocation4 [shape = 's32[1]{0}', space=sflag, size = 0x4, scoped, tag = 'scoped memory for tpu_custom_call.1']
    #allocation5 [shape = 'u8[32768]{0}', space=vmem, size = 0x8000, scoped, tag = 'output window, operand 0, single buffered']
    %6 = vsyncpa [#allocation3], 0
    %7 = vsyncpa [#allocation4], 0
    // Predicated region
    $region2: #{tpu_custom_call.1} parent=1 // pred_check
      _
    $region3: #{tpu_custom_call.1} parent=1 // pred_check_branch
      %9 = sbr.rel (0) target = $region5
    $region4: #{tpu_custom_call.1} parent=1 // pred_region
      %s11 = ssub.s32 1024, 1024
      %12 = vsyncadd [#allocation3], %s11
      %s13 = sshll.u32 [#allocation2], 4
      %s14 = int_to_ptr.vmem [resolvable:$true] %s13
      %19 = dma.hbm_to_vmem [thread:$0]  %s0, 1024, %s14, [#allocation3], 640, 512, 32
    $region5: #{tpu_custom_call.1} parent=1 // pred_fallthru
      _
    // Predicated region
    $region6: #{tpu_custom_call.1} parent=1 // pred_check
      _
    $region7: #{tpu_custom_call.1} parent=1 // pred_check_branch
      %21 = sbr.rel (0) target = $region9
    $region8: #{tpu_custom_call.1} parent=1 // pred_region
      %22 = dma.done [#allocation3], 1024
    $region9: #{tpu_custom_call.1} parent=1 // pred_fallthru
      _
    %v23 = vld [vmem:[#allocation2] sm:$0xff]
    %v24 = vld [vmem:[#allocation2 + $0x8] sm:$0xff]
    %v25 = vld [vmem:[#allocation2 + $0x10] sm:$0xff]
    %v26 = vld [vmem:[#allocation2 + $0x18] sm:$0xff]
    %v27 = vld [vmem:[#allocation2 + $0x20] sm:$0xff]
    %v28 = vld [vmem:[#allocation2 + $0x28] sm:$0xff]
    %v29 = vld [vmem:[#allocation2 + $0x30] sm:$0xff]
    %v30 = vld [vmem:[#allocation2 + $0x38] sm:$0xff]
    %31 = vst [vmem:[#allocation5] sm:$0xff] %v23
    %32 = vst [vmem:[#allocation5 + $0x8] sm:$0xff] %v24
    %33 = vst [vmem:[#allocation5 + $0x10] sm:$0xff] %v25
    %34 = vst [vmem:[#allocation5 + $0x18] sm:$0xff] %v26
    %35 = vst [vmem:[#allocation5 + $0x20] sm:$0xff] %v27
    %36 = vst [vmem:[#allocation5 + $0x28] sm:$0xff] %v28
    %37 = vst [vmem:[#allocation5 + $0x30] sm:$0xff] %v29
    %38 = vst [vmem:[#allocation5 + $0x38] sm:$0xff] %v30
    // Predicated region
    $region10: #{tpu_custom_call.1} parent=1 // pred_check
      _
    $region11: #{tpu_custom_call.1} parent=1 // pred_check_branch
      %40 = sbr.rel (0) target = $region13
    $region12: #{tpu_custom_call.1} parent=1 // pred_region
      %s42 = ssub.s32 1024, 1024
      %43 = vsyncadd [#allocation4], %s42
      %s44 = sshll.u32 [#allocation5], 4
      %s45 = int_to_ptr.vmem [resolvable:$true] %s44
      %50 = dma.vmem_to_hbm [thread:$0]  %s45, 1024, %s1, [#allocation4], 512, 512, 32
    $region13: #{tpu_custom_call.1} parent=1 // pred_fallthru
      _
    // Predicated region
    $region14: #{tpu_custom_call.1} parent=1 // pred_check
      _
    $region15: #{tpu_custom_call.1} parent=1 // pred_check_branch
      %52 = sbr.rel (0) target = $region17
    $region16: #{tpu_custom_call.1} parent=1 // pred_region
      %53 = dma.done [#allocation4], 1024
    $region17: #{tpu_custom_call.1} parent=1 // pred_fallthru
      _
    %54 = vsyncpa [#allocation3], 1
    %55 = vsyncpa [#allocation4], 1

</llo_original>
